<compile_context>
chip_gen: v7x
topology: tpu7x:2x2x1
jax: 0.10.0
libtpu: 0.0.40
codegen_flags: <defaults>
</compile_context>

<pallas_src>
import functools

import jax
import jax.numpy as jnp
from jax.experimental import pallas as pl
from jax.experimental.pallas import tpu as pltpu


def _round_up(x, m):
    return ((x + m - 1) // m) * m


def _elup1(x):
    # torch: exp(x).where(x < 0, x + 1)  -> exp(x) if x < 0 else x + 1
    return jnp.where(x < 0.0, jnp.exp(x), x + 1.0)


def _var_activation(log_var, kind):
    if kind == "exp":
        return jnp.exp(log_var)
    elif kind == "relu":
        return jnp.maximum(log_var, jnp.zeros_like(log_var))
    elif kind == "square":
        return jnp.square(log_var)
    elif kind == "abs":
        return jnp.abs(log_var)
    elif kind == "elup1":
        return _elup1(log_var)
    else:
        raise Exception("Variance activation function unknown.")


def _decoder_kernel(xm_ref, xv_ref, w1m_ref, w1v_ref, b1_ref,
                    w2m_ref, w2v_ref, mean_ref, var_ref, *,
                    dec_var_activation):
    # Hidden layer: two block-diagonal row-blocks feeding one f32 accumulator,
    # plus the (f32) first-layer bias row, then ReLU.
    h_pre = (jnp.dot(xm_ref[...], w1m_ref[...],
                     preferred_element_type=jnp.float32)
             + jnp.dot(xv_ref[...], w1v_ref[...],
                       preferred_element_type=jnp.float32)
             + b1_ref[...])
    # Cast back to the weight compute dtype (bf16 in production, no-op for f32)
    # so the second matmul also runs at full MXU rate.
    h = jnp.maximum(h_pre, 0.0).astype(w2m_ref.dtype)

    # Output layers (second-layer biases folded into the constant-1 hidden row).
    mean = jnp.dot(h, w2m_ref[...], preferred_element_type=jnp.float32)
    log_var = jnp.dot(h, w2v_ref[...], preferred_element_type=jnp.float32)

    mean_ref[...] = mean.astype(mean_ref.dtype)
    var_ref[...] = _var_activation(log_var, dec_var_activation).astype(var_ref.dtype)


def fuse_params(params, compute_dtype=jnp.bfloat16):
    """Builds fused, padded decoder weights.

    Returns (w1m, w1v, b1, w2m, w2v) with
      w1m : [lod_m, Hp]   mean-path rows of the block-diagonal first layer
      w1v : [lod_v, Hp]   var-path rows
      b1  : [1, Hp]  f32  first-layer biases + 1.0 at the constant-1 hidden unit
      w2m : [Hp, out_dim] mean output layer (bias folded at the constant row)
      w2v : [Hp, out_dim] var  output layer (bias folded at the constant row)
    Hp = round_up(hidden_mean + hidden_var + 1, 128) for lane-dense h."""
    wm1, bm1, wm2, bm2, wv1, bv1, wv2, bv2 = params
    lod_m, hm = wm1.shape
    lod_v, hv = wv1.shape
    out_dim = wm2.shape[1]

    h_raw = hm + hv + 1                     # +1: constant-1 bias-carrier unit
    hp = _round_up(h_raw, 128)              # padded hidden width (zero FLOPs free)

    w1m = jnp.zeros((lod_m, hp), jnp.float32).at[:, :hm].set(wm1)
    w1v = jnp.zeros((lod_v, hp), jnp.float32).at[:, hm:hm + hv].set(wv1)

    b1 = jnp.zeros((1, hp), jnp.float32)
    b1 = b1.at[0, :hm].set(bm1[0])
    b1 = b1.at[0, hm:hm + hv].set(bv1[0])
    b1 = b1.at[0, hm + hv].set(1.0)         # constant unit: ReLU(1) = 1

    w2m = jnp.zeros((hp, out_dim), jnp.float32).at[:hm, :].set(wm2)
    w2m = w2m.at[hm + hv, :].set(bm2[0])
    w2v = jnp.zeros((hp, out_dim), jnp.float32).at[hm:hm + hv, :].set(wv2)
    w2v = w2v.at[hm + hv, :].set(bv2[0])

    # b1 stays f32: it is added to the f32 accumulator after the dots.
    return (w1m.astype(compute_dtype), w1v.astype(compute_dtype), b1,
            w2m.astype(compute_dtype), w2v.astype(compute_dtype))


def split_diag_gaussian_decoder(latent_mean, latent_cov, fused_params,
                                dec_var_activation="elup1", batch_tile=4096):
    """SplitDiagGaussianDecoder forward in one Pallas kernel.

    Returns (mean, var), each [B, out_dim] float32."""
    w1m, w1v, b1, w2m, w2v = fused_params
    B, lod_m = latent_mean.shape
    lod_v = latent_cov.shape[1]
    hp = w1m.shape[1]
    out_dim = w2m.shape[1]
    compute_dtype = w1m.dtype

    xm = latent_mean.astype(compute_dtype)
    xv = latent_cov.astype(compute_dtype)

    # Batch tiling: big tiles (>=256 rows, capped at batch_tile) to amortize
    # per-step overhead, but ~8 grid steps at large B so the "parallel" batch
    # axis gives both v7x TensorCores work.  Rows are independent; Pallas pads
    # a partial last block (exp on padded rows is dropped by out_shape).
    tb = min(batch_tile, max(256, _round_up(pl.cdiv(B, 8), 8)))
    if tb >= B:
        tb = B                      # whole batch in one (sublane-valid) block
    grid_b = pl.cdiv(B, tb)

    kernel = functools.partial(_decoder_kernel,
                               dec_var_activation=dec_var_activation)

    mean, var = pl.pallas_call(
        kernel,
        out_shape=(jax.ShapeDtypeStruct((B, out_dim), jnp.float32),
                   jax.ShapeDtypeStruct((B, out_dim), jnp.float32)),
        grid_spec=pl.GridSpec(
            grid=(grid_b,),
            in_specs=[
                pl.BlockSpec((tb, lod_m), lambda i: (i, 0)),    # latent_mean tile
                pl.BlockSpec((tb, lod_v), lambda i: (i, 0)),    # latent_cov tile
                pl.BlockSpec((lod_m, hp), lambda i: (0, 0)),    # resident w1m
                pl.BlockSpec((lod_v, hp), lambda i: (0, 0)),    # resident w1v
                pl.BlockSpec((1, hp), lambda i: (0, 0)),        # resident b1 (f32)
                pl.BlockSpec((hp, out_dim), lambda i: (0, 0)),  # resident w2m
                pl.BlockSpec((hp, out_dim), lambda i: (0, 0)),  # resident w2v
            ],
            out_specs=(pl.BlockSpec((tb, out_dim), lambda i: (i, 0)),
                       pl.BlockSpec((tb, out_dim), lambda i: (i, 0))),
        ),
        compiler_params=pltpu.CompilerParams(
            dimension_semantics=("parallel",),      # megacore split on v7x
            vmem_limit_bytes=32 * 1024 * 1024,      # safe on v5e/v6e/v7x
        ),
    )(xm, xv, w1m, w1v, b1, w2m, w2v)
    return mean, var


def init_params(key, lod, hidden_mean, hidden_var, out_dim):
    """Deterministic parameter init mimicking nn.Linear's uniform init.

    Weights are stored as [in, out] (transpose of PyTorch's [out, in]) so the
    decoder computes y = x @ W + b."""
    ks = jax.random.split(key, 8)

    def linear(kw, kb, fan_in, fan_out):
        bound = 1.0 / jnp.sqrt(fan_in)
        w = jax.random.uniform(kw, (fan_in, fan_out), jnp.float32, -bound, bound)
        b = jax.random.uniform(kb, (1, fan_out), jnp.float32, -bound, bound)
        return w, b

    wm1, bm1 = linear(ks[0], ks[1], lod, hidden_mean)
    wm2, bm2 = linear(ks[2], ks[3], hidden_mean, out_dim)
    wv1, bv1 = linear(ks[4], ks[5], lod, hidden_var)
    wv2, bv2 = linear(ks[6], ks[7], hidden_var, out_dim)
    return (wm1, bm1, wm2, bm2, wv1, bv1, wv2, bv2)


def _reference(latent_mean, latent_cov, params, dec_var_activation):
    """Pure-JAX reference (unfused) for correctness checking."""
    wm1, bm1, wm2, bm2, wv1, bv1, wv2, bv2 = params
    h_m = jnp.maximum(latent_mean @ wm1 + bm1, 0.0)
    mean = h_m @ wm2 + bm2
    h_v = jnp.maximum(latent_cov @ wv1 + bv1, 0.0)
    log_var = h_v @ wv2 + bv2
    return mean, _var_activation(log_var, dec_var_activation)


if __name__ == "__main__":
    # Small shapes consistent with the low-dimensional decoder:
    #   latent obs dim (lod) = 16, hidden = 32, out_dim = 8, batch = 8
    B, LOD, HIDDEN, OUT = 8, 16, 32, 8
    DEC_VAR_ACT = "elup1"

    key = jax.random.PRNGKey(0)
    k_lm, k_lc, k_p = jax.random.split(key, 3)
    latent_mean = jax.random.normal(k_lm, (B, LOD), jnp.float32)
    # latent_cov: diagonal covariance entries (positive), same dim as lod
    latent_cov = jax.nn.softplus(jax.random.normal(k_lc, (B, LOD), jnp.float32))

    params = init_params(k_p, LOD, HIDDEN, HIDDEN, OUT)
    ref_mean, ref_var = _reference(latent_mean, latent_cov, params, DEC_VAR_ACT)

    # f32 path: tight correctness check against the unfused reference.
    fused_f32 = fuse_params(params, compute_dtype=jnp.float32)
    mean32, var32 = split_diag_gaussian_decoder(
        latent_mean, latent_cov, fused_f32, dec_var_activation=DEC_VAR_ACT)
    jax.block_until_ready((mean32, var32))
    assert mean32.shape == (B, OUT) and var32.shape == (B, OUT)
    assert jnp.allclose(mean32, ref_mean, atol=1e-5, rtol=1e-5)
    assert jnp.allclose(var32, ref_var, atol=1e-5, rtol=1e-5)

    # bf16 path (production default): halves HBM input bytes, 2x MXU rate on
    # v6e/v7x; looser tolerance per bf16 mantissa.
    fused_bf16 = fuse_params(params, compute_dtype=jnp.bfloat16)
    mean16, var16 = split_diag_gaussian_decoder(
        latent_mean, latent_cov, fused_bf16, dec_var_activation=DEC_VAR_ACT)
    jax.block_until_ready((mean16, var16))
    assert jnp.allclose(mean16, ref_mean, atol=5e-2, rtol=5e-2)
    assert jnp.allclose(var16, ref_var, atol=5e-2, rtol=5e-2)

    assert bool(jnp.all(var32 >= 0.0)) and bool(jnp.all(var16 >= 0.0))
    print("KERNEL_OK")
</pallas_src>

<mosaic_0001>
module attributes {stable_mosaic.version = 11 : i64} {
  func.func @_decoder_kernel(%arg0: i32, %arg1: memref<8x16xf32, #tpu.memory_space<vmem>>, %arg2: memref<8x16xf32, #tpu.memory_space<vmem>>, %arg3: memref<16x128xf32, #tpu.memory_space<vmem>>, %arg4: memref<16x128xf32, #tpu.memory_space<vmem>>, %arg5: memref<1x128xf32, #tpu.memory_space<vmem>>, %arg6: memref<128x8xf32, #tpu.memory_space<vmem>>, %arg7: memref<128x8xf32, #tpu.memory_space<vmem>>, %arg8: memref<8x8xf32, #tpu.memory_space<vmem>>, %arg9: memref<8x8xf32, #tpu.memory_space<vmem>>) attributes {dimension_semantics = [#tpu.dimension_semantics<parallel>], iteration_bounds = array<i64: 1>, scalar_prefetch = 0 : i64, scratch_operands = 0 : i64, tpu.core_type = #tpu.core_type<tc>, window_params = [{transform_indices = @transform_0, window_bounds = array<i64: 8, 16>}, {transform_indices = @transform_1, window_bounds = array<i64: 8, 16>}, {pipeline_mode = #tpu.pipeline_mode<synchronous>, transform_indices = @transform_2, window_bounds = array<i64: 16, 128>}, {pipeline_mode = #tpu.pipeline_mode<synchronous>, transform_indices = @transform_3, window_bounds = array<i64: 16, 128>}, {pipeline_mode = #tpu.pipeline_mode<synchronous>, transform_indices = @transform_4, window_bounds = array<i64: 1, 128>}, {pipeline_mode = #tpu.pipeline_mode<synchronous>, transform_indices = @transform_5, window_bounds = array<i64: 128, 8>}, {pipeline_mode = #tpu.pipeline_mode<synchronous>, transform_indices = @transform_6, window_bounds = array<i64: 128, 8>}, {transform_indices = @transform_7, window_bounds = array<i64: 8, 8>}, {transform_indices = @transform_8, window_bounds = array<i64: 8, 8>}]} {
    %c0 = arith.constant 0 : index
    %c0_0 = arith.constant 0 : index
    %0 = vector.load %arg1[%c0, %c0_0] : memref<8x16xf32, #tpu.memory_space<vmem>>, vector<8x16xf32>
    %c0_1 = arith.constant 0 : index
    %c0_2 = arith.constant 0 : index
    %1 = vector.load %arg3[%c0_1, %c0_2] : memref<16x128xf32, #tpu.memory_space<vmem>>, vector<16x128xf32>
    %cst = arith.constant dense<0.000000e+00> : vector<8x128xf32>
    %2 = tpu.matmul %0, %1, %cst {dimension_numbers = #tpu.dot_dimension_numbers<[1], [0], [0], [1], [0, 0, 1, 1], [], []>} : vector<8x16xf32>, vector<16x128xf32>, vector<8x128xf32> -> vector<8x128xf32>
    %c0_3 = arith.constant 0 : index
    %c0_4 = arith.constant 0 : index
    %3 = vector.load %arg2[%c0_3, %c0_4] : memref<8x16xf32, #tpu.memory_space<vmem>>, vector<8x16xf32>
    %c0_5 = arith.constant 0 : index
    %c0_6 = arith.constant 0 : index
    %4 = vector.load %arg4[%c0_5, %c0_6] : memref<16x128xf32, #tpu.memory_space<vmem>>, vector<16x128xf32>
    %cst_7 = arith.constant dense<0.000000e+00> : vector<8x128xf32>
    %5 = tpu.matmul %3, %4, %cst_7 {dimension_numbers = #tpu.dot_dimension_numbers<[1], [0], [0], [1], [0, 0, 1, 1], [], []>} : vector<8x16xf32>, vector<16x128xf32>, vector<8x128xf32> -> vector<8x128xf32>
    %6 = arith.addf %2, %5 : vector<8x128xf32>
    %c0_8 = arith.constant 0 : index
    %c0_9 = arith.constant 0 : index
    %7 = vector.load %arg5[%c0_8, %c0_9] : memref<1x128xf32, #tpu.memory_space<vmem>>, vector<1x128xf32>
    %8 = vector.broadcast %7 : vector<1x128xf32> to vector<8x128xf32>
    %9 = arith.addf %6, %8 : vector<8x128xf32>
    %cst_10 = arith.constant 0.000000e+00 : f32
    %10 = vector.broadcast %cst_10 : f32 to vector<8x128xf32>
    %11 = arith.maximumf %9, %10 : vector<8x128xf32>
    %c0_11 = arith.constant 0 : index
    %c0_12 = arith.constant 0 : index
    %12 = vector.load %arg6[%c0_11, %c0_12] : memref<128x8xf32, #tpu.memory_space<vmem>>, vector<128x8xf32>
    %cst_13 = arith.constant dense<0.000000e+00> : vector<8x8xf32>
    %13 = tpu.matmul %11, %12, %cst_13 {dimension_numbers = #tpu.dot_dimension_numbers<[1], [0], [0], [1], [0, 0, 1, 1], [], []>} : vector<8x128xf32>, vector<128x8xf32>, vector<8x8xf32> -> vector<8x8xf32>
    %c0_14 = arith.constant 0 : index
    %c0_15 = arith.constant 0 : index
    %14 = vector.load %arg7[%c0_14, %c0_15] : memref<128x8xf32, #tpu.memory_space<vmem>>, vector<128x8xf32>
    %cst_16 = arith.constant dense<0.000000e+00> : vector<8x8xf32>
    %15 = tpu.matmul %11, %14, %cst_16 {dimension_numbers = #tpu.dot_dimension_numbers<[1], [0], [0], [1], [0, 0, 1, 1], [], []>} : vector<8x128xf32>, vector<128x8xf32>, vector<8x8xf32> -> vector<8x8xf32>
    %c0_17 = arith.constant 0 : index
    %c0_18 = arith.constant 0 : index
    %16 = vector.load %arg8[%c0_17, %c0_18] : memref<8x8xf32, #tpu.memory_space<vmem>>, vector<8x8xf32>
    tpu.vector_store %arg8[%c0_17, %c0_18], %13 {strides = array<i32>} : memref<8x8xf32, #tpu.memory_space<vmem>>, vector<8x8xf32>,
    %cst_19 = arith.constant 0.000000e+00 : f32
    %17 = vector.broadcast %cst_19 : f32 to vector<8x8xf32>
    %18 = arith.cmpf olt, %15, %17 : vector<8x8xf32>
    %19 = math.exp %15 : vector<8x8xf32>
    %cst_20 = arith.constant 1.000000e+00 : f32
    %20 = vector.broadcast %cst_20 : f32 to vector<8x8xf32>
    %21 = arith.addf %15, %20 : vector<8x8xf32>
    %22 = arith.select %18, %19, %21 : vector<8x8xi1>, vector<8x8xf32>
    %c0_21 = arith.constant 0 : index
    %c0_22 = arith.constant 0 : index
    %23 = vector.load %arg9[%c0_21, %c0_22] : memref<8x8xf32, #tpu.memory_space<vmem>>, vector<8x8xf32>
    tpu.vector_store %arg9[%c0_21, %c0_22], %22 {strides = array<i32>} : memref<8x8xf32, #tpu.memory_space<vmem>>, vector<8x8xf32>,
    return
  }
  func.func @transform_0(%arg0: i32) -> (i32, i32) {
    %c0_i32 = arith.constant 0 : i32
    %c0_i32_0 = arith.constant 0 : i32
    return %arg0, %c0_i32 : i32, i32
  }
  func.func @transform_1(%arg0: i32) -> (i32, i32) {
    %c0_i32 = arith.constant 0 : i32
    %c0_i32_0 = arith.constant 0 : i32
    return %arg0, %c0_i32 : i32, i32
  }
  func.func @transform_2(%arg0: i32) -> (i32, i32) {
    %c0_i32 = arith.constant 0 : i32
    %c0_i32_0 = arith.constant 0 : i32
    %c0_i32_1 = arith.constant 0 : i32
    return %c0_i32, %c0_i32_0 : i32, i32
  }
  func.func @transform_3(%arg0: i32) -> (i32, i32) {
    %c0_i32 = arith.constant 0 : i32
    %c0_i32_0 = arith.constant 0 : i32
    %c0_i32_1 = arith.constant 0 : i32
    return %c0_i32, %c0_i32_0 : i32, i32
  }
  func.func @transform_4(%arg0: i32) -> (i32, i32) {
    %c0_i32 = arith.constant 0 : i32
    %c0_i32_0 = arith.constant 0 : i32
    %c0_i32_1 = arith.constant 0 : i32
    return %c0_i32, %c0_i32_0 : i32, i32
  }
  func.func @transform_5(%arg0: i32) -> (i32, i32) {
    %c0_i32 = arith.constant 0 : i32
    %c0_i32_0 = arith.constant 0 : i32
    %c0_i32_1 = arith.constant 0 : i32
    return %c0_i32, %c0_i32_0 : i32, i32
  }
  func.func @transform_6(%arg0: i32) -> (i32, i32) {
    %c0_i32 = arith.constant 0 : i32
    %c0_i32_0 = arith.constant 0 : i32
    %c0_i32_1 = arith.constant 0 : i32
    return %c0_i32, %c0_i32_0 : i32, i32
  }
  func.func @transform_7(%arg0: i32) -> (i32, i32) {
    %c0_i32 = arith.constant 0 : i32
    %c0_i32_0 = arith.constant 0 : i32
    return %arg0, %c0_i32 : i32, i32
  }
  func.func @transform_8(%arg0: i32) -> (i32, i32) {
    %c0_i32 = arith.constant 0 : i32
    %c0_i32_0 = arith.constant 0 : i32
    return %arg0, %c0_i32 : i32, i32
  }
}

</mosaic_0001>

<llo_original>
// kernel: tpu_custom_call.1
$region0: #{tpu_custom_call.1}
  #allocation0 [shape = 'u32[]', space=smem, size = 0x4, offset = 0x4, fixed_abs, tag = 'smem constant byte address 0x4 - core index']
  #allocation1 [shape = 'u32[144,128]{1,0:T(1,128)}', space=vmem, size = 0x12000, scoped, tag = 'internal scratch']
  %s0 = inlined_call_operand.vmem [shape: f32[8,16], index: 0, kind: input, shape index: {}]
  %s1 = inlined_call_operand.vmem [shape: f32[8,16], index: 1, kind: input, shape index: {}]
  %s2 = inlined_call_operand.vmem [shape: f32[16,128], index: 2, kind: input, shape index: {}]
  %s3 = inlined_call_operand.vmem [shape: f32[16,128], index: 3, kind: input, shape index: {}]
  %s4 = inlined_call_operand.vmem [shape: f32[1,128], index: 4, kind: input, shape index: {}]
  %s5 = inlined_call_operand.vmem [shape: f32[128,8], index: 5, kind: input, shape index: {}]
  %s6 = inlined_call_operand.vmem [shape: f32[128,8], index: 6, kind: input, shape index: {}]
  %s7 = inlined_call_operand.hbm [shape: f32[8,8], index: 7, kind: output, shape index: {0}]
  %s8 = inlined_call_operand.hbm [shape: f32[8,8], index: 8, kind: output, shape index: {1}]
  %9 = xla_tuple %s7, %s8
  %s10 = sld [smem:[#allocation0]]
  $region46: #{tpu_custom_call.1} parent=0
    _
  %s12 = ssub.s32 1, %s10
  %s13 = scalar_select 0, %s12, %s10
  $region1: #{tpu_custom_call.1} parent=0
    #allocation2 [shape = 'u8[4096]{0}', space=vmem, size = 0x1000, scoped, tag = 'output window, operand 0, single buffered']
    #allocation3 [shape = 's32[1]{0}', space=sflag, size = 0x4, scoped, tag = 'scoped memory for tpu_custom_call.1']
    #allocation4 [shape = 'u8[4096]{0}', space=vmem, size = 0x1000, scoped, tag = 'output window, operand 1, single buffered']
    #allocation5 [shape = 's32[1]{0}', space=sflag, size = 0x4, scoped, tag = 'scoped memory for tpu_custom_call.1']
    %14 = vsyncpa [#allocation3], 0
    %15 = vsyncpa [#allocation5], 0
    // Predicated region
    $region2: #{tpu_custom_call.1} parent=1 // pred_check
      _
    $region3: #{tpu_custom_call.1} parent=1 // pred_check_branch
      %17 = sbr.rel (0) target = $region5
    $region4: #{tpu_custom_call.1} parent=1 // pred_region
      _
    $region5: #{tpu_custom_call.1} parent=1 // pred_fallthru
      _
    // Predicated region
    $region6: #{tpu_custom_call.1} parent=1 // pred_check
      _
    $region7: #{tpu_custom_call.1} parent=1 // pred_check_branch
      %19 = sbr.rel (0) target = $region9
    $region8: #{tpu_custom_call.1} parent=1 // pred_region
      _
    $region9: #{tpu_custom_call.1} parent=1 // pred_fallthru
      _
    // Predicated region
    $region10: #{tpu_custom_call.1} parent=1 // pred_check
      _
    $region11: #{tpu_custom_call.1} parent=1 // pred_check_branch
      %21 = sbr.rel (0) target = $region13
    $region12: #{tpu_custom_call.1} parent=1 // pred_region
      _
    $region13: #{tpu_custom_call.1} parent=1 // pred_fallthru
      _
    // Predicated region
    $region14: #{tpu_custom_call.1} parent=1 // pred_check
      _
    $region15: #{tpu_custom_call.1} parent=1 // pred_check_branch
      %23 = sbr.rel (0) target = $region17
    $region16: #{tpu_custom_call.1} parent=1 // pred_region
      _
    $region17: #{tpu_custom_call.1} parent=1 // pred_fallthru
      _
    // Predicated region
    $region18: #{tpu_custom_call.1} parent=1 // pred_check
      _
    $region19: #{tpu_custom_call.1} parent=1 // pred_check_branch
      %25 = sbr.rel (0) target = $region21
    $region20: #{tpu_custom_call.1} parent=1 // pred_region
      _
    $region21: #{tpu_custom_call.1} parent=1 // pred_fallthru
      _
    // Predicated region
    $region22: #{tpu_custom_call.1} parent=1 // pred_check
      _
    $region23: #{tpu_custom_call.1} parent=1 // pred_check_branch
      %27 = sbr.rel (0) target = $region25
    $region24: #{tpu_custom_call.1} parent=1 // pred_region
      _
    $region25: #{tpu_custom_call.1} parent=1 // pred_fallthru
      _
    // Predicated region
    $region26: #{tpu_custom_call.1} parent=1 // pred_check
      _
    $region27: #{tpu_custom_call.1} parent=1 // pred_check_branch
      %29 = sbr.rel (0) target = $region29
    $region28: #{tpu_custom_call.1} parent=1 // pred_region
      _
    $region29: #{tpu_custom_call.1} parent=1 // pred_fallthru
      _
    %v30 = vld [vmem:[%s0] sm:$0xff]
    %v31 = vld [vmem:[%s2] sm:$0xff]
    %v32 = vld [vmem:[%s2 + $0x8] sm:$0xff]
    %v33 = vld [vmem:[%s1] sm:$0xff]
    %v34 = vld [vmem:[%s3] sm:$0xff]
    %v35 = vld [vmem:[%s3 + $0x8] sm:$0xff]
    %vm36 = vcmask 130048
    %v38 = vsel %vm36, %v33, 0
    %40 = vmatprep.subr.mxu0 0.0
    %41 = vmatpush1.msra.mxu0 %v34
    %42 = vmatprep.subr.mxu0 0.0
    %43 = vmatpush1.msra.mxu0 %v35
    %44 = vmatprep.subr.mxu0 0.0
    %45 = vmatpush1.msra.mxu0 0.0
    %46 = vmatprep.subr.mxu0 0.0
    %47 = vmatpush1.msra.mxu0 0.0
    %48 = vmatprep.subr.mxu0 0.0
    %49 = vmatpush1.msra.mxu0 0.0
    %50 = vmatprep.subr.mxu0 0.0
    %51 = vmatpush1.msra.mxu0 0.0
    %52 = vmatprep.subr.mxu0 0.0
    %53 = vmatpush1.msra.mxu0 0.0
    %54 = vmatprep.subr.mxu0 0.0
    %55 = vmatpush1.msra.mxu0 0.0
    %56 = vmatprep.subr.mxu0 0.0
    %57 = vmatpush1.msra.mxu0 0.0
    %58 = vmatprep.subr.mxu0 0.0
    %59 = vmatpush1.msra.mxu0 0.0
    %60 = vmatprep.subr.mxu0 0.0
    %61 = vmatpush1.msra.mxu0 0.0
    %62 = vmatprep.subr.mxu0 0.0
    %63 = vmatpush1.msra.mxu0 0.0
    %64 = vmatprep.subr.mxu0 0.0
    %65 = vmatpush1.msra.mxu0 0.0
    %66 = vmatprep.subr.mxu0 0.0
    %67 = vmatpush1.msra.mxu0 0.0
    %68 = vmatprep.subr.mxu0 0.0
    %69 = vmatpush1.msra.mxu0 0.0
    %70 = vmatprep.subr.mxu0 0.0
    %71 = vmatpush1.msra.mxu0 0.0
    %72 = vmatprep.subr.mxu0 0.0
    %73 = vmatpush1.msra.mxu0 0.0
    %74 = vmatprep.subr.mxu0 0.0
    %75 = vmatpush1.msra.mxu0 0.0
    %76 = vmatprep.subr.mxu0 0.0
    %77 = vmatpush1.msra.mxu0 0.0
    %78 = vmatprep.subr.mxu0 0.0
    %79 = vmatpush1.msra.mxu0 0.0
    %80 = vmatprep.subr.mxu0 0.0
    %81 = vmatpush1.msra.mxu0 0.0
    %82 = vmatprep.subr.mxu0 0.0
    %83 = vmatpush1.msra.mxu0 0.0
    %84 = vmatprep.subr.mxu0 0.0
    %85 = vmatpush1.msra.mxu0 0.0
    %86 = vmatprep.subr.mxu0 0.0
    %87 = vmatpush1.msra.mxu0 0.0
    %88 = vmatprep.subr.mxu0 0.0
    %89 = vmatpush1.msra.mxu0 0.0
    %90 = vmatprep.subr.mxu0 0.0
    %91 = vmatpush1.msra.mxu0 0.0
    %92 = vmatprep.subr.mxu0 0.0
    %93 = vmatpush1.msra.mxu0 0.0
    %94 = vmatprep.subr.mxu0 0.0
    %95 = vmatpush1.msra.mxu0 0.0
    %96 = vmatprep.subr.mxu0 0.0
    %97 = vmatpush1.msra.mxu0 0.0
    %98 = vmatprep.subr.mxu0 0.0
    %99 = vmatpush1.msra.mxu0 0.0
    %100 = vmatprep.subr.mxu0 0.0
    %101 = vmatpush1.msra.mxu0 0.0
    %102 = vmatprep.subr.mxu0 0.0
    %103 = vmatpush1.msra.mxu0 0.0
    %104 = vmatprep.mubr.f32.mxu0 0.0
    %105 = vmatmul.mubr.f32.gmra.mrb[0].mxu0 %v38
    %v106 = vpop.f32.mrb[0].mxu0
    %v107 = vadd.f32 0.0, %v106
    %v108 = vpop.f32.mrb[0].mxu0
    %109 = vdwg.mxu0
    %v111 = vsel %vm36, %v30, 0
    %113 = vmatprep.subr.mxu0 0.0
    %114 = vmatpush1.msra.mxu0 %v31
    %115 = vmatprep.subr.mxu0 0.0
    %116 = vmatpush1.msra.mxu0 %v32
    %117 = vmatprep.subr.mxu0 0.0
    %118 = vmatpush1.msra.mxu0 0.0
    %119 = vmatprep.subr.mxu0 0.0
    %120 = vmatpush1.msra.mxu0 0.0
    %121 = vmatprep.subr.mxu0 0.0
    %122 = vmatpush1.msra.mxu0 0.0
    %123 = vmatprep.subr.mxu0 0.0
    %124 = vmatpush1.msra.mxu0 0.0
    %125 = vmatprep.subr.mxu0 0.0
    %126 = vmatpush1.msra.mxu0 0.0
    %127 = vmatprep.subr.mxu0 0.0
    %128 = vmatpush1.msra.mxu0 0.0
    %129 = vmatprep.subr.mxu0 0.0
    %130 = vmatpush1.msra.mxu0 0.0
    %131 = vmatprep.subr.mxu0 0.0
    %132 = vmatpush1.msra.mxu0 0.0
    %133 = vmatprep.subr.mxu0 0.0
    %134 = vmatpush1.msra.mxu0 0.0
    %135 = vmatprep.subr.mxu0 0.0
    %136 = vmatpush1.msra.mxu0 0.0
    %137 = vmatprep.subr.mxu0 0.0
    %138 = vmatpush1.msra.mxu0 0.0
    %139 = vmatprep.subr.mxu0 0.0
    %140 = vmatpush1.msra.mxu0 0.0
    %141 = vmatprep.subr.mxu0 0.0
    %142 = vmatpush1.msra.mxu0 0.0
    %143 = vmatprep.subr.mxu0 0.0
    %144 = vmatpush1.msra.mxu0 0.0
    %145 = vmatprep.subr.mxu0 0.0
    %146 = vmatpush1.msra.mxu0 0.0
    %147 = vmatprep.subr.mxu0 0.0
    %148 = vmatpush1.msra.mxu0 0.0
    %149 = vmatprep.subr.mxu0 0.0
    %150 = vmatpush1.msra.mxu0 0.0
    %151 = vmatprep.subr.mxu0 0.0
    %152 = vmatpush1.msra.mxu0 0.0
    %153 = vmatprep.subr.mxu0 0.0
    %154 = vmatpush1.msra.mxu0 0.0
    %155 = vmatprep.subr.mxu0 0.0
    %156 = vmatpush1.msra.mxu0 0.0
    %157 = vmatprep.subr.mxu0 0.0
    %158 = vmatpush1.msra.mxu0 0.0
    %159 = vmatprep.subr.mxu0 0.0
    %160 = vmatpush1.msra.mxu0 0.0
    %161 = vmatprep.subr.mxu0 0.0
    %162 = vmatpush1.msra.mxu0 0.0
    %163 = vmatprep.subr.mxu0 0.0
    %164 = vmatpush1.msra.mxu0 0.0
    %165 = vmatprep.subr.mxu0 0.0
    %166 = vmatpush1.msra.mxu0 0.0
    %167 = vmatprep.subr.mxu0 0.0
    %168 = vmatpush1.msra.mxu0 0.0
    %169 = vmatprep.subr.mxu0 0.0
    %170 = vmatpush1.msra.mxu0 0.0
    %171 = vmatprep.subr.mxu0 0.0
    %172 = vmatpush1.msra.mxu0 0.0
    %173 = vmatprep.subr.mxu0 0.0
    %174 = vmatpush1.msra.mxu0 0.0
    %175 = vmatprep.subr.mxu0 0.0
    %176 = vmatpush1.msra.mxu0 0.0
    %177 = vmatprep.mubr.f32.mxu0 0.0
    %178 = vmatmul.mubr.f32.gmra.mrb[0].mxu0 %v111
    %v179 = vpop.f32.mrb[0].mxu0
    %v180 = vadd.f32 %v107, %v179
    %v181 = vpop.f32.mrb[0].mxu0
    %182 = vdwg.mxu0
    %v183 = vld [vmem:[%s4] sm:$0x1]
    %v185 = vlaneseq
    %v186 = vshrl.u32 %v185, 7
    %v187 = vsub.s32 0, %v186
    %v188 = vrot.slane %v183, %v187
    %v190 = vadd.f32 %v180, %v188
    %v191 = vmax.f32 %v190, 0.0
    %v192 = vld [vmem:[%s5] sm:$0xff]
    %v193 = vld [vmem:[%s5 + $0x8] sm:$0xff]
    %v194 = vld [vmem:[%s5 + $0x10] sm:$0xff]
    %v195 = vld [vmem:[%s5 + $0x18] sm:$0xff]
    %v196 = vld [vmem:[%s5 + $0x20] sm:$0xff]
    %v197 = vld [vmem:[%s5 + $0x28] sm:$0xff]
    %v198 = vld [vmem:[%s5 + $0x30] sm:$0xff]
    %v199 = vld [vmem:[%s5 + $0x38] sm:$0xff]
    %v200 = vld [vmem:[%s5 + $0x40] sm:$0xff]
    %v201 = vld [vmem:[%s5 + $0x48] sm:$0xff]
    %v202 = vld [vmem:[%s5 + $0x50] sm:$0xff]
    %v203 = vld [vmem:[%s5 + $0x58] sm:$0xff]
    %v204 = vld [vmem:[%s5 + $0x60] sm:$0xff]
    %v205 = vld [vmem:[%s5 + $0x68] sm:$0xff]
    %v206 = vld [vmem:[%s5 + $0x70] sm:$0xff]
    %v207 = vld [vmem:[%s5 + $0x78] sm:$0xff]
    %208 = vmatprep.subr.mxu0 0.0
    %209 = vmatpush1.msra.mxu0 %v192
    %210 = vmatprep.subr.mxu0 0.0
    %211 = vmatpush1.msra.mxu0 %v193
    %212 = vmatprep.subr.mxu0 0.0
    %213 = vmatpush1.msra.mxu0 %v194
    %214 = vmatprep.subr.mxu0 0.0
    %215 = vmatpush1.msra.mxu0 %v195
    %216 = vmatprep.subr.mxu0 0.0
    %217 = vmatpush1.msra.mxu0 %v196
    %218 = vmatprep.subr.mxu0 0.0
    %219 = vmatpush1.msra.mxu0 %v197
    %220 = vmatprep.subr.mxu0 0.0
    %221 = vmatpush1.msra.mxu0 %v198
    %222 = vmatprep.subr.mxu0 0.0
    %223 = vmatpush1.msra.mxu0 %v199
    %224 = vmatprep.subr.mxu0 0.0
    %225 = vmatpush1.msra.mxu0 %v200
    %226 = vmatprep.subr.mxu0 0.0
    %227 = vmatpush1.msra.mxu0 %v201
    %228 = vmatprep.subr.mxu0 0.0
    %229 = vmatpush1.msra.mxu0 %v202
    %230 = vmatprep.subr.mxu0 0.0
    %231 = vmatpush1.msra.mxu0 %v203
    %232 = vmatprep.subr.mxu0 0.0
    %233 = vmatpush1.msra.mxu0 %v204
    %234 = vmatprep.subr.mxu0 0.0
    %235 = vmatpush1.msra.mxu0 %v205
    %236 = vmatprep.subr.mxu0 0.0
    %237 = vmatpush1.msra.mxu0 %v206
    %238 = vmatprep.subr.mxu0 0.0
    %239 = vmatpush1.msra.mxu0 %v207
    %240 = vmatprep.subr.mxu0 0.0
    %241 = vmatpush1.msra.mxu0 0.0
    %242 = vmatprep.subr.mxu0 0.0
    %243 = vmatpush1.msra.mxu0 0.0
    %244 = vmatprep.subr.mxu0 0.0
    %245 = vmatpush1.msra.mxu0 0.0
    %246 = vmatprep.subr.mxu0 0.0
    %247 = vmatpush1.msra.mxu0 0.0
    %248 = vmatprep.subr.mxu0 0.0
    %249 = vmatpush1.msra.mxu0 0.0
    %250 = vmatprep.subr.mxu0 0.0
    %251 = vmatpush1.msra.mxu0 0.0
    %252 = vmatprep.subr.mxu0 0.0
    %253 = vmatpush1.msra.mxu0 0.0
    %254 = vmatprep.subr.mxu0 0.0
    %255 = vmatpush1.msra.mxu0 0.0
    %256 = vmatprep.subr.mxu0 0.0
    %257 = vmatpush1.msra.mxu0 0.0
    %258 = vmatprep.subr.mxu0 0.0
    %259 = vmatpush1.msra.mxu0 0.0
    %260 = vmatprep.subr.mxu0 0.0
    %261 = vmatpush1.msra.mxu0 0.0
    %262 = vmatprep.subr.mxu0 0.0
    %263 = vmatpush1.msra.mxu0 0.0
    %264 = vmatprep.subr.mxu0 0.0
    %265 = vmatpush1.msra.mxu0 0.0
    %266 = vmatprep.subr.mxu0 0.0
    %267 = vmatpush1.msra.mxu0 0.0
    %268 = vmatprep.subr.mxu0 0.0
    %269 = vmatpush1.msra.mxu0 0.0
    %270 = vmatprep.subr.mxu0 0.0
    %271 = vmatpush1.msra.mxu0 0.0
    %272 = vmatprep.mubr.f32.mxu0 0.0
    %273 = vmatmul.mubr.f32.gmra.mrb[0].mxu0 %v191
    %v274 = vpop.f32.mrb[0].mxu0
    %v275 = vadd.f32 0.0, %v274
    %v276 = vpop.f32.mrb[0].mxu0
    %277 = vdwg.mxu0
    %v278 = vld [vmem:[%s6] sm:$0xff]
    %v279 = vld [vmem:[%s6 + $0x8] sm:$0xff]
    %v280 = vld [vmem:[%s6 + $0x10] sm:$0xff]
    %v281 = vld [vmem:[%s6 + $0x18] sm:$0xff]
    %v282 = vld [vmem:[%s6 + $0x20] sm:$0xff]
    %v283 = vld [vmem:[%s6 + $0x28] sm:$0xff]
    %v284 = vld [vmem:[%s6 + $0x30] sm:$0xff]
    %v285 = vld [vmem:[%s6 + $0x38] sm:$0xff]
    %v286 = vld [vmem:[%s6 + $0x40] sm:$0xff]
    %v287 = vld [vmem:[%s6 + $0x48] sm:$0xff]
    %v288 = vld [vmem:[%s6 + $0x50] sm:$0xff]
    %v289 = vld [vmem:[%s6 + $0x58] sm:$0xff]
    %v290 = vld [vmem:[%s6 + $0x60] sm:$0xff]
    %v291 = vld [vmem:[%s6 + $0x68] sm:$0xff]
    %v292 = vld [vmem:[%s6 + $0x70] sm:$0xff]
    %v293 = vld [vmem:[%s6 + $0x78] sm:$0xff]
    %294 = vmatprep.subr.mxu0 0.0
    %295 = vmatpush1.msra.mxu0 %v278
    %296 = vmatprep.subr.mxu0 0.0
    %297 = vmatpush1.msra.mxu0 %v279
    %298 = vmatprep.subr.mxu0 0.0
    %299 = vmatpush1.msra.mxu0 %v280
    %300 = vmatprep.subr.mxu0 0.0
    %301 = vmatpush1.msra.mxu0 %v281
    %302 = vmatprep.subr.mxu0 0.0
    %303 = vmatpush1.msra.mxu0 %v282
    %304 = vmatprep.subr.mxu0 0.0
    %305 = vmatpush1.msra.mxu0 %v283
    %306 = vmatprep.subr.mxu0 0.0
    %307 = vmatpush1.msra.mxu0 %v284
    %308 = vmatprep.subr.mxu0 0.0
    %309 = vmatpush1.msra.mxu0 %v285
    %310 = vmatprep.subr.mxu0 0.0
    %311 = vmatpush1.msra.mxu0 %v286
    %312 = vmatprep.subr.mxu0 0.0
    %313 = vmatpush1.msra.mxu0 %v287
    %314 = vmatprep.subr.mxu0 0.0
    %315 = vmatpush1.msra.mxu0 %v288
    %316 = vmatprep.subr.mxu0 0.0
    %317 = vmatpush1.msra.mxu0 %v289
    %318 = vmatprep.subr.mxu0 0.0
    %319 = vmatpush1.msra.mxu0 %v290
    %320 = vmatprep.subr.mxu0 0.0
    %321 = vmatpush1.msra.mxu0 %v291
    %322 = vmatprep.subr.mxu0 0.0
    %323 = vmatpush1.msra.mxu0 %v292
    %324 = vmatprep.subr.mxu0 0.0
    %325 = vmatpush1.msra.mxu0 %v293
    %326 = vmatprep.subr.mxu0 0.0
    %327 = vmatpush1.msra.mxu0 0.0
    %328 = vmatprep.subr.mxu0 0.0
    %329 = vmatpush1.msra.mxu0 0.0
    %330 = vmatprep.subr.mxu0 0.0
    %331 = vmatpush1.msra.mxu0 0.0
    %332 = vmatprep.subr.mxu0 0.0
    %333 = vmatpush1.msra.mxu0 0.0
    %334 = vmatprep.subr.mxu0 0.0
    %335 = vmatpush1.msra.mxu0 0.0
    %336 = vmatprep.subr.mxu0 0.0
    %337 = vmatpush1.msra.mxu0 0.0
    %338 = vmatprep.subr.mxu0 0.0
    %339 = vmatpush1.msra.mxu0 0.0
    %340 = vmatprep.subr.mxu0 0.0
    %341 = vmatpush1.msra.mxu0 0.0
    %342 = vmatprep.subr.mxu0 0.0
    %343 = vmatpush1.msra.mxu0 0.0
    %344 = vmatprep.subr.mxu0 0.0
    %345 = vmatpush1.msra.mxu0 0.0
    %346 = vmatprep.subr.mxu0 0.0
    %347 = vmatpush1.msra.mxu0 0.0
    %348 = vmatprep.subr.mxu0 0.0
    %349 = vmatpush1.msra.mxu0 0.0
    %350 = vmatprep.subr.mxu0 0.0
    %351 = vmatpush1.msra.mxu0 0.0
    %352 = vmatprep.subr.mxu0 0.0
    %353 = vmatpush1.msra.mxu0 0.0
    %354 = vmatprep.subr.mxu0 0.0
    %355 = vmatpush1.msra.mxu0 0.0
    %356 = vmatprep.subr.mxu0 0.0
    %357 = vmatpush1.msra.mxu0 0.0
    %358 = vmatprep.mubr.f32.mxu0 0.0
    %359 = vmatmul.mubr.f32.gmra.mrb[0].mxu0 %v191
    %v360 = vpop.f32.mrb[0].mxu0
    %v361 = vadd.f32 0.0, %v360
    %v362 = vpop.f32.mrb[0].mxu0
    %363 = vdwg.mxu0
    %vm364 = vcmask 64512
    %365 = vst.msk [vmem:[#allocation2] sm:$0xff] %vm364, %v275
    %vm366 = vcmp.lt.f32.partialorder %v361, 0.0
    %v367 = vmul.f32 %v361, 1.442695
    %v368 = vpow.pop %v367
    %v369 = vadd.f32 %v361, 1.0
    %v370 = vsel %vm366, %v368, %v369
    %371 = vst.msk [vmem:[#allocation4] sm:$0xff] %vm364, %v370
    // Predicated region
    $region30: #{tpu_custom_call.1} parent=1 // pred_check
      _
    $region31: #{tpu_custom_call.1} parent=1 // pred_check_branch
      %373 = sbr.rel (0) target = $region33
    $region32: #{tpu_custom_call.1} parent=1 // pred_region
      %s375 = ssub.s32 128, 128
      %376 = vsyncadd [#allocation3], %s375
      %s378 = sshll.u32 [#allocation2], 4
      %s379 = int_to_ptr.vmem [resolvable:$true] %s378
      %381 = dma.vmem_to_hbm [thread:$0]  %s379, 128, %s7, [#allocation3]
    $region33: #{tpu_custom_call.1} parent=1 // pred_fallthru
      _
    // Predicated region
    $region34: #{tpu_custom_call.1} parent=1 // pred_check
      _
    $region35: #{tpu_custom_call.1} parent=1 // pred_check_branch
      %383 = sbr.rel (0) target = $region37
    $region36: #{tpu_custom_call.1} parent=1 // pred_region
      %s385 = ssub.s32 128, 128
      %386 = vsyncadd [#allocation5], %s385
      %s388 = sshll.u32 [#allocation4], 4
      %s389 = int_to_ptr.vmem [resolvable:$true] %s388
      %391 = dma.vmem_to_hbm [thread:$0]  %s389, 128, %s8, [#allocation5]
    $region37: #{tpu_custom_call.1} parent=1 // pred_fallthru
      _
    // Predicated region
    $region38: #{tpu_custom_call.1} parent=1 // pred_check
      _
    $region39: #{tpu_custom_call.1} parent=1 // pred_check_branch
      %393 = sbr.rel (0) target = $region41
    $region40: #{tpu_custom_call.1} parent=1 // pred_region
      %394 = dma.done [#allocation3], 128
    $region41: #{tpu_custom_call.1} parent=1 // pred_fallthru
      _
    // Predicated region
    $region42: #{tpu_custom_call.1} parent=1 // pred_check
      _
    $region43: #{tpu_custom_call.1} parent=1 // pred_check_branch
      %396 = sbr.rel (0) target = $region45
    $region44: #{tpu_custom_call.1} parent=1 // pred_region
      %397 = dma.done [#allocation5], 128
    $region45: #{tpu_custom_call.1} parent=1 // pred_fallthru
      _
    %398 = vsyncpa [#allocation3], 1
    %399 = vsyncpa [#allocation5], 1

</llo_original>
